<compile_context>
chip_gen: v7x
topology: tpu7x:2x2x1
jax: 0.10.0
libtpu: 0.0.40
codegen_flags: <defaults>
</compile_context>

<pallas_src>
import functools

import jax
import jax.numpy as jnp
from jax.experimental import pallas as pl
from jax.experimental.pallas import tpu as pltpu


# ---------------------------------------------------------------------------
# Stage 1: fused feature / attention-vector projection   h_ext = x @ W'
# ---------------------------------------------------------------------------
def _proj_kernel(x_ref, w_ref, h_ref):
    h_ref[...] = jnp.dot(
        x_ref[...], w_ref[...], preferred_element_type=jnp.float32
    ).astype(h_ref.dtype)


# ---------------------------------------------------------------------------
# Stage 2: row-tiled masked softmax attention + att @ h
# ---------------------------------------------------------------------------
def _attn_kernel(adj_ref, s1_ref, s2_ref, h_ref, out_ref, *, negative_slope):
    # e[i, j] = s1_i + s2_j         (TM, N)  -- broadcast add, no transpose
    e = s1_ref[...] + s2_ref[...]
    if negative_slope != 1.0:                      # statically skipped when 1.0
        e = jnp.where(e > 0, e, jnp.float32(negative_slope) * e)

    # adjacency mask + numerically-stable row softmax (un-normalized)
    att = jnp.where(adj_ref[...] > 0, e, jnp.float32(-1.0e12))
    att = att - jnp.max(att, axis=1, keepdims=True)
    p = jnp.exp(att)                               # values in [0, 1]
    inv = pl.reciprocal(jnp.sum(p, axis=1, keepdims=True), approx=True)

    # dominant matmul in bf16 with f32 accumulation; normalize afterwards
    acc = jnp.dot(p.astype(jnp.bfloat16), h_ref[...],
                  preferred_element_type=jnp.float32)
    out_ref[...] = (acc * inv).astype(out_ref.dtype)


def _choose_tm(n, tm):
    """Pick a row-tile size whose (TM, N) f32 adj tile is ~<=2 MiB."""
    if n % 8 != 0:
        return n                       # single full block (full dims allowed)
    if tm is None:
        tm = max(8, ((2 << 20) // max(n * 4, 1)) // 8 * 8)
        tm = min(tm, 256)
    tm = min(tm, n)
    tm = max(8, (tm // 8) * 8)
    return tm


def gat_forward(input_h, adj, w, a, *, negative_slope=1.0, tm=None):
    f32 = jnp.float32
    N, in_f = input_h.shape
    out_f = w.shape[1]

    # Fold attention-vector projections into the feature matmul:
    # W' = [w | w @ a[:F] | w @ a[F:]]   (in_f, F + 2)
    c1 = (w @ a[:out_f]).astype(f32)
    c2 = (w @ a[out_f:]).astype(f32)
    w_ext = jnp.concatenate([w.astype(f32), c1, c2], axis=1)

    tm = _choose_tm(N, tm)
    grid = (pl.cdiv(N, tm),)
    parallel = pltpu.CompilerParams(dimension_semantics=("parallel",))

    # ---- stage 1: h_ext = x @ W' -----------------------------------------
    h_ext = pl.pallas_call(
        _proj_kernel,
        out_shape=jax.ShapeDtypeStruct((N, out_f + 2), f32),
        grid=grid,
        in_specs=[
            pl.BlockSpec((tm, in_f), lambda i: (i, 0)),
            pl.BlockSpec((in_f, out_f + 2), lambda i: (0, 0)),
        ],
        out_specs=pl.BlockSpec((tm, out_f + 2), lambda i: (i, 0)),
        compiler_params=parallel,
    )(input_h.astype(f32), w_ext)

    h = h_ext[:, :out_f]                               # (N, F)  f32
    s1 = h_ext[:, out_f:out_f + 1]                     # (N, 1)  column
    s2_row = h_ext[:, out_f + 1].reshape(1, N)         # (1, N)  one-time layout
    h_b = h.astype(jnp.bfloat16)                       # resident bf16 operand

    # ---- stage 2: attention ------------------------------------------------
    kernel = functools.partial(_attn_kernel, negative_slope=negative_slope)
    cost = pl.CostEstimate(
        flops=int(2 * N * N * out_f + 4 * N * N),
        transcendentals=int(N * N),
        bytes_accessed=int(adj.size * adj.dtype.itemsize + h_b.size * 2
                           + s1.size * 4 + s2_row.size * 4 + N * out_f * 4),
    )
    out = pl.pallas_call(
        kernel,
        out_shape=jax.ShapeDtypeStruct((N, out_f), input_h.dtype),
        grid=grid,
        in_specs=[
            pl.BlockSpec((tm, N), lambda i: (i, 0)),       # adj row slab
            pl.BlockSpec((tm, 1), lambda i: (i, 0)),       # s1 column tile
            pl.BlockSpec((1, N), lambda i: (0, 0)),        # s2 row (resident)
            pl.BlockSpec((N, out_f), lambda i: (0, 0)),    # h bf16 (resident)
        ],
        out_specs=pl.BlockSpec((tm, out_f), lambda i: (i, 0)),
        compiler_params=parallel,
        cost_estimate=cost,
    )(adj, s1, s2_row, h_b)
    return out


# ---------------------------------------------------------------------------
# Helpers / self-check
# ---------------------------------------------------------------------------
def _xavier_uniform(key, shape, gain):
    fan_in, fan_out = shape[0], shape[1]
    limit = gain * (6.0 / (fan_in + fan_out)) ** 0.5
    return jax.random.uniform(key, shape, jnp.float32, -limit, limit)


def _reference(input_h, adj, w, a, negative_slope=1.0):
    """Pure-JAX f32 replica of the exact PyTorch forward (with concat)."""
    h = input_h @ w
    N, F = h.shape
    rep1 = jnp.tile(h, (1, N)).reshape(N * N, -1)
    rep2 = jnp.tile(h, (N, 1))
    cat = jnp.concatenate([rep1, rep2], axis=1).reshape(N, N, 2 * F)
    e = (cat @ a)[..., 0]
    e = jnp.where(e > 0, e, negative_slope * e)
    att = jnp.where(adj > 0, e, -1.0e12 * jnp.ones_like(e))
    att = jax.nn.softmax(att, axis=1)
    return att @ h


if __name__ == "__main__":
    N, in_features, out_features = 64, 16, 32
    key = jax.random.PRNGKey(0)
    k_x, k_adj, k_w, k_a = jax.random.split(key, 4)

    input_h = jax.random.normal(k_x, (N, in_features), jnp.float32)
    adj = jax.random.bernoulli(k_adj, 0.5, (N, N)).astype(jnp.float32)

    w = _xavier_uniform(k_w, (in_features, out_features), gain=1.414)
    a = _xavier_uniform(k_a, (2 * out_features, 1), gain=1.614)

    # tm=16 -> grid of 4 row tiles (exercises the tiled/pipelined path).
    out = gat_forward(input_h, adj, w, a, negative_slope=1.0, tm=16)
    out = jax.block_until_ready(out)

    ref = _reference(input_h, adj, w, a, negative_slope=1.0)
    assert out.shape == (N, out_features)
    max_err = float(jnp.max(jnp.abs(out - ref)))
    # bf16 operands on att@h (+ approx reciprocal) with f32 accumulation.
    assert jnp.allclose(out, ref, atol=3e-2, rtol=3e-2), max_err

    print("KERNEL_OK")
</pallas_src>

<mosaic_0001>
module attributes {stable_mosaic.version = 11 : i64} {
  func.func @_proj_kernel(%arg0: i32, %arg1: memref<16x16xf32, #tpu.memory_space<vmem>>, %arg2: memref<16x34xf32, #tpu.memory_space<vmem>>, %arg3: memref<16x34xf32, #tpu.memory_space<vmem>>) attributes {dimension_semantics = [#tpu.dimension_semantics<parallel>], iteration_bounds = array<i64: 4>, scalar_prefetch = 0 : i64, scratch_operands = 0 : i64, tpu.core_type = #tpu.core_type<tc>, window_params = [{transform_indices = @transform_0, window_bounds = array<i64: 16, 16>}, {pipeline_mode = #tpu.pipeline_mode<synchronous>, transform_indices = @transform_1, window_bounds = array<i64: 16, 34>}, {transform_indices = @transform_2, window_bounds = array<i64: 16, 34>}]} {
    %c0 = arith.constant 0 : index
    %c0_0 = arith.constant 0 : index
    %0 = vector.load %arg1[%c0, %c0_0] : memref<16x16xf32, #tpu.memory_space<vmem>>, vector<16x16xf32>
    %c0_1 = arith.constant 0 : index
    %c0_2 = arith.constant 0 : index
    %1 = vector.load %arg2[%c0_1, %c0_2] : memref<16x34xf32, #tpu.memory_space<vmem>>, vector<16x34xf32>
    %cst = arith.constant dense<0.000000e+00> : vector<16x34xf32>
    %2 = tpu.matmul %0, %1, %cst {dimension_numbers = #tpu.dot_dimension_numbers<[1], [0], [0], [1], [0, 0, 1, 1], [], []>} : vector<16x16xf32>, vector<16x34xf32>, vector<16x34xf32> -> vector<16x34xf32>
    %c0_3 = arith.constant 0 : index
    %c0_4 = arith.constant 0 : index
    %3 = vector.load %arg3[%c0_3, %c0_4] : memref<16x34xf32, #tpu.memory_space<vmem>>, vector<16x34xf32>
    tpu.vector_store %arg3[%c0_3, %c0_4], %2 {strides = array<i32>} : memref<16x34xf32, #tpu.memory_space<vmem>>, vector<16x34xf32>,
    return
  }
  func.func @transform_0(%arg0: i32) -> (i32, i32) {
    %c0_i32 = arith.constant 0 : i32
    %c0_i32_0 = arith.constant 0 : i32
    return %arg0, %c0_i32 : i32, i32
  }
  func.func @transform_1(%arg0: i32) -> (i32, i32) {
    %c0_i32 = arith.constant 0 : i32
    %c0_i32_0 = arith.constant 0 : i32
    %c0_i32_1 = arith.constant 0 : i32
    return %c0_i32, %c0_i32_0 : i32, i32
  }
  func.func @transform_2(%arg0: i32) -> (i32, i32) {
    %c0_i32 = arith.constant 0 : i32
    %c0_i32_0 = arith.constant 0 : i32
    return %arg0, %c0_i32 : i32, i32
  }
}

</mosaic_0001>

<llo_original>
// kernel: tpu_custom_call.1
$region0: #{tpu_custom_call.1}
  #allocation0 [shape = 'u32[]', space=smem, size = 0x4, offset = 0x4, fixed_abs, tag = 'smem constant byte address 0x4 - core index']
  #allocation1 [shape = 'u32[144,128]{1,0:T(1,128)}', space=vmem, size = 0x12000, scoped, tag = 'internal scratch']
  %s0 = inlined_call_operand.vmem [shape: f32[64,16], index: 0, kind: input, shape index: {}]
  %s1 = inlined_call_operand.vmem [shape: f32[16,34], index: 1, kind: input, shape index: {}]
  %s2 = inlined_call_operand.vmem [shape: f32[64,34], index: 2, kind: output, shape index: {}]
  %s3 = sld [smem:[#allocation0]]
  $region41: #{tpu_custom_call.1} parent=0
    _
  %s5 = ssub.s32 1, %s3
  %s6 = scalar_select 0, %s5, %s3
  loop: start=0, step=1, limit=6
  $region2: #{tpu_custom_call.1} parent=0 // loop_pre_header
    _
  $region3: #{tpu_custom_call.1} parent=0 // loop_header
    %s8 = sphi 0, %s12
    %p9 = scmp.ge.s32.totalorder %s8, 6
    %s18 = sphi 0, %s20
    %s21 = sphi 0, %s18
    %s22 = sphi 0, %s21
    %s38 = sphi 0, %s22
    %s42 = sphi 0, %s42
    %s44 = sphi 0, %s42
    %s45 = sphi 0, %s44
    %s59 = sphi 0, %s45
    %s65 = sphi 0, %s67
    %s68 = sphi 0, %s65
    %s69 = sphi 0, %s68
    %s85 = sphi 0, %s69
  $region4: #{tpu_custom_call.1} parent=0 // loop_header_branch
    %11 = sbr.rel (%p9) target = $region8
  $region5: #{tpu_custom_call.1} parent=0 // loop_body
    %s13 = ssub.s32 %s8, 1
    %s14 = ssub.s32 %s8, 2
    %s15 = sadd.s32 %s8, 1
    %s16 = ssub.s32 %s8, %s15
    %p17 = scmp.eq.s32.totalorder %s16, 0
    %s19 = sadd.s32 %s18, 1
    %s20 = scalar_select %p17, %s18, %s19
    %p23 = pneg %p17
    %p24 = scmp.eq.s32.totalorder %s8, 3
    %p25 = por %p23, %p24
    %p26 = scmp.ne.s32.totalorder %s18, %s21
    %p27 = scmp.eq.s32.totalorder %s8, 0
    %p28 = por %p26, %p27
    %p29 = scmp.ne.s32.totalorder %s18, %s21
    %p30 = scmp.eq.s32.totalorder %s13, 3
    %p31 = por %p29, %p30
    %p32 = scmp.ne.s32.totalorder %s21, %s22
    %p33 = scmp.eq.s32.totalorder %s13, 0
    %p34 = por %p32, %p33
    %p35 = scmp.ne.s32.totalorder %s21, %s22
    %p36 = scmp.eq.s32.totalorder %s14, 3
    %p37 = por %p35, %p36
    %p39 = scmp.ne.s32.totalorder %s22, %s38
    %p40 = scmp.eq.s32.totalorder %s14, 0
    %p41 = por %p39, %p40
    %s43 = sadd.s32 %s42, 1
    %p46 = scmp.eq.s32.totalorder %s8, 3
    %p47 = scmp.ne.s32.totalorder %s42, %s44
    %p48 = scmp.eq.s32.totalorder %s8, 0
    %p49 = por %p47, %p48
    %p50 = scmp.ne.s32.totalorder %s42, %s44
    %p51 = scmp.eq.s32.totalorder %s13, 3
    %p52 = por %p50, %p51
    %p53 = scmp.ne.s32.totalorder %s44, %s45
    %p54 = scmp.eq.s32.totalorder %s13, 0
    %p55 = por %p53, %p54
    %p56 = scmp.ne.s32.totalorder %s44, %s45
    %p57 = scmp.eq.s32.totalorder %s14, 3
    %p58 = por %p56, %p57
    %p60 = scmp.ne.s32.totalorder %s45, %s59
    %p61 = scmp.eq.s32.totalorder %s14, 0
    %p62 = por %p60, %p61
    %s63 = ssub.s32 %s8, %s15
    %p64 = scmp.eq.s32.totalorder %s63, 0
    %s66 = sadd.s32 %s65, 1
    %s67 = scalar_select %p64, %s65, %s66
    %p70 = pneg %p64
    %p71 = scmp.eq.s32.totalorder %s8, 3
    %p72 = por %p70, %p71
    %p73 = scmp.ne.s32.totalorder %s65, %s68
    %p74 = scmp.eq.s32.totalorder %s8, 0
    %p75 = por %p73, %p74
    %p76 = scmp.ne.s32.totalorder %s65, %s68
    %p77 = scmp.eq.s32.totalorder %s13, 3
    %p78 = por %p76, %p77
    %p79 = scmp.ne.s32.totalorder %s68, %s69
    %p80 = scmp.eq.s32.totalorder %s13, 0
    %p81 = por %p79, %p80
    %p82 = scmp.ne.s32.totalorder %s68, %s69
    %p83 = scmp.eq.s32.totalorder %s14, 3
    %p84 = por %p82, %p83
    %p86 = scmp.ne.s32.totalorder %s69, %s85
    %p87 = scmp.eq.s32.totalorder %s14, 0
    %p88 = por %p86, %p87
    %p89 = scmp.le.s32.totalorder 1, %s8
    %p90 = scmp.lt.s32.totalorder %s8, 5
    %p91 = pnand %p89, %p90
    %p92 = pneg %p91
    // Predicated region
    $region9: #{tpu_custom_call.1} parent=5 // pred_check
      _
    $region10: #{tpu_custom_call.1} parent=5 // pred_check_branch
      %94 = sbr.rel (%p91) target = $region12
    $region11: #{tpu_custom_call.1} parent=5 // pred_region
      %s95 = ssub.s32 %s8, 1
      // Predicated region
      $region13: #{tpu_custom_call.1} parent=11 // pred_check
        %p96 = pneg %p55
      $region14: #{tpu_custom_call.1} parent=11 // pred_check_branch
        %98 = sbr.rel (%p96) target = $region16
      $region15: #{tpu_custom_call.1} parent=11 // pred_region
        _
      $region16: #{tpu_custom_call.1} parent=11 // pred_fallthru
        _
    $region12: #{tpu_custom_call.1} parent=5 // pred_fallthru
      _
    %p99 = scmp.lt.s32.totalorder %s8, 4
    // Predicated region
    $region17: #{tpu_custom_call.1} parent=5 // pred_check
      %p100 = pneg %p99
    $region18: #{tpu_custom_call.1} parent=5 // pred_check_branch
      %102 = sbr.rel (%p100) target = $region20
    $region19: #{tpu_custom_call.1} parent=5 // pred_region
      // Predicated region
      $region21: #{tpu_custom_call.1} parent=19 // pred_check
        %p103 = pneg %p28
      $region22: #{tpu_custom_call.1} parent=19 // pred_check_branch
        %105 = sbr.rel (%p103) target = $region24
      $region23: #{tpu_custom_call.1} parent=19 // pred_region
        %s106 = smul.u32 2, %s8
        %p107 = scmp.lt.s32.totalorder %s106, 7
        %s108 = scalar_select %p107, %s106, 7
        %s109 = smul.addr %s108, 8
        %s110 = scalar_lea.vmem %s0, %s109
        %s111 = smul.u32 2, %s8
      $region24: #{tpu_custom_call.1} parent=19 // pred_fallthru
        _
    $region20: #{tpu_custom_call.1} parent=5 // pred_fallthru
      _
    %p112 = scmp.le.s32.totalorder 1, %s8
    %p113 = scmp.lt.s32.totalorder %s8, 5
    %p114 = pnand %p112, %p113
    %p115 = pneg %p114
    // Predicated region
    $region25: #{tpu_custom_call.1} parent=5 // pred_check
      _
    $region26: #{tpu_custom_call.1} parent=5 // pred_check_branch
      %117 = sbr.rel (%p114) target = $region28
    $region27: #{tpu_custom_call.1} parent=5 // pred_region
      %s118 = ssub.s32 %s8, 1
      %s119 = smul.u32 2, %s13
      %p120 = scmp.lt.s32.totalorder %s119, 7
      %s121 = scalar_select %p120, %s119, 7
      %s122 = smul.addr %s121, 8
      %s123 = scalar_lea.vmem %s0, %s122
      %p124 = pneg %p34
      %p125 = pneg %p31
      %p126 = pneg %p55
      %p127 = pneg %p52
      %p128 = pneg %p81
      %p129 = pneg %p78
      %s130 = smul.u32 2, %s13
      %p131 = scmp.lt.s32.totalorder %s130, 7
      %s132 = scalar_select %p131, %s130, 7
      %s133 = smul.addr %s132, 8
      %s134 = scalar_lea.vmem %s2, %s133
      %s135 = smul.u32 2, %s13
      %p136 = scmp.lt.s32.totalorder %s135, 7
      %s137 = scalar_select %p136, %s135, 7
      %s138 = smul.addr %s137, 8
      %s139 = scalar_lea.vmem %s0, %s138
      %s140 = smul.u32 2, %s13
      %s141 = smul.u32 2, %s13
      %p142 = scmp.lt.s32.totalorder %s141, 7
      %s143 = scalar_select %p142, %s141, 7
      %s144 = smul.addr %s143, 8
      %s145 = scalar_lea.vmem %s2, %s144
      %s146 = smul.u32 2, %s13
      %v147 = vld [vmem:[%s139] sm:$0xff]
      %v148 = vld [vmem:[%s139 + $0x8] sm:$0xff]
      %v149 = vld [vmem:[%s1] sm:$0xff]
      %v150 = vld [vmem:[%s1 + $0x8] sm:$0xff]
      %vm151 = vcmask 130048
      %v153 = vsel %vm151, %v147, 0
      %v156 = vsel %vm151, %v148, 0
      %158 = vmatprep.subr.mxu0 0.0
      %159 = vmatpush1.msra.mxu0 %v149
      %160 = vmatprep.subr.mxu0 0.0
      %161 = vmatpush1.msra.mxu0 %v150
      %162 = vmatprep.subr.mxu0 0.0
      %163 = vmatpush1.msra.mxu0 0.0
      %164 = vmatprep.subr.mxu0 0.0
      %165 = vmatpush1.msra.mxu0 0.0
      %166 = vmatprep.subr.mxu0 0.0
      %167 = vmatpush1.msra.mxu0 0.0
      %168 = vmatprep.subr.mxu0 0.0
      %169 = vmatpush1.msra.mxu0 0.0
      %170 = vmatprep.subr.mxu0 0.0
      %171 = vmatpush1.msra.mxu0 0.0
      %172 = vmatprep.subr.mxu0 0.0
      %173 = vmatpush1.msra.mxu0 0.0
      %174 = vmatprep.subr.mxu0 0.0
      %175 = vmatpush1.msra.mxu0 0.0
      %176 = vmatprep.subr.mxu0 0.0
      %177 = vmatpush1.msra.mxu0 0.0
      %178 = vmatprep.subr.mxu0 0.0
      %179 = vmatpush1.msra.mxu0 0.0
      %180 = vmatprep.subr.mxu0 0.0
      %181 = vmatpush1.msra.mxu0 0.0
      %182 = vmatprep.subr.mxu0 0.0
      %183 = vmatpush1.msra.mxu0 0.0
      %184 = vmatprep.subr.mxu0 0.0
      %185 = vmatpush1.msra.mxu0 0.0
      %186 = vmatprep.subr.mxu0 0.0
      %187 = vmatpush1.msra.mxu0 0.0
      %188 = vmatprep.subr.mxu0 0.0
      %189 = vmatpush1.msra.mxu0 0.0
      %190 = vmatprep.subr.mxu0 0.0
      %191 = vmatpush1.msra.mxu0 0.0
      %192 = vmatprep.subr.mxu0 0.0
      %193 = vmatpush1.msra.mxu0 0.0
      %194 = vmatprep.subr.mxu0 0.0
      %195 = vmatpush1.msra.mxu0 0.0
      %196 = vmatprep.subr.mxu0 0.0
      %197 = vmatpush1.msra.mxu0 0.0
      %198 = vmatprep.subr.mxu0 0.0
      %199 = vmatpush1.msra.mxu0 0.0
      %200 = vmatprep.subr.mxu0 0.0
      %201 = vmatpush1.msra.mxu0 0.0
      %202 = vmatprep.subr.mxu0 0.0
      %203 = vmatpush1.msra.mxu0 0.0
      %204 = vmatprep.subr.mxu0 0.0
      %205 = vmatpush1.msra.mxu0 0.0
      %206 = vmatprep.subr.mxu0 0.0
      %207 = vmatpush1.msra.mxu0 0.0
      %208 = vmatprep.subr.mxu0 0.0
      %209 = vmatpush1.msra.mxu0 0.0
      %210 = vmatprep.subr.mxu0 0.0
      %211 = vmatpush1.msra.mxu0 0.0
      %212 = vmatprep.subr.mxu0 0.0
      %213 = vmatpush1.msra.mxu0 0.0
      %214 = vmatprep.subr.mxu0 0.0
      %215 = vmatpush1.msra.mxu0 0.0
      %216 = vmatprep.subr.mxu0 0.0
      %217 = vmatpush1.msra.mxu0 0.0
      %218 = vmatprep.subr.mxu0 0.0
      %219 = vmatpush1.msra.mxu0 0.0
      %220 = vmatprep.subr.mxu0 0.0
      %221 = vmatpush1.msra.mxu0 0.0
      %222 = vmatprep.mubr.f32.mxu0 0.0
      %223 = vmatmul.mubr.f32.gmra.mrb[0].mxu0 %v153
      %v224 = vpop.f32.mrb[0].mxu0
      %v225 = vadd.f32 0.0, %v224
      %v226 = vpop.f32.mrb[0].mxu0
      %227 = vmatprep.mubr.f32.mxu0 0.0
      %228 = vmatmul.mubr.f32.gmra.mrb[0].mxu0 %v156
      %v229 = vpop.f32.mrb[0].mxu0
      %v230 = vadd.f32 0.0, %v229
      %v231 = vpop.f32.mrb[0].mxu0
      %232 = vdwg.mxu0
      %vm233 = vcmask 277504
      %234 = vst.msk [vmem:[%s145] sm:$0xff] %vm233, %v225
      %235 = vst.msk [vmem:[%s145 + $0x8] sm:$0xff] %vm233, %v230
      %s236 = smul.u32 2, %s13
      %p237 = scmp.lt.s32.totalorder %s236, 7
      %s238 = scalar_select %p237, %s236, 7
      %s239 = smul.addr %s238, 8
      %s240 = scalar_lea.vmem %s2, %s239
      // Predicated region
      $region29: #{tpu_custom_call.1} parent=27 // pred_check
        %p241 = pneg %p78
      $region30: #{tpu_custom_call.1} parent=27 // pred_check_branch
        %243 = sbr.rel (%p241) target = $region32
      $region31: #{tpu_custom_call.1} parent=27 // pred_region
        %s244 = smul.u32 2, %s13
      $region32: #{tpu_custom_call.1} parent=27 // pred_fallthru
        _
    $region28: #{tpu_custom_call.1} parent=5 // pred_fallthru
      _
    %p245 = scmp.le.s32.totalorder 2, %s8
    // Predicated region
    $region33: #{tpu_custom_call.1} parent=5 // pred_check
      %p246 = pneg %p245
    $region34: #{tpu_custom_call.1} parent=5 // pred_check_branch
      %248 = sbr.rel (%p246) target = $region36
    $region35: #{tpu_custom_call.1} parent=5 // pred_region
      %s249 = ssub.s32 %s8, 2
      // Predicated region
      $region37: #{tpu_custom_call.1} parent=35 // pred_check
        %p250 = pneg %p84
      $region38: #{tpu_custom_call.1} parent=35 // pred_check_branch
        %252 = sbr.rel (%p250) target = $region40
      $region39: #{tpu_custom_call.1} parent=35 // pred_region
        %s253 = smul.u32 2, %s14
        %p254 = scmp.lt.s32.totalorder %s253, 7
        %s255 = scalar_select %p254, %s253, 7
        %s256 = smul.addr %s255, 8
        %s257 = scalar_lea.vmem %s2, %s256
      $region40: #{tpu_custom_call.1} parent=35 // pred_fallthru
        _
    $region36: #{tpu_custom_call.1} parent=5 // pred_fallthru
      _
  $region6: #{tpu_custom_call.1} parent=0 // loop_footer
    %s12 = sadd.s32 1, %s8
  $region7: #{tpu_custom_call.1} parent=0 // loop_footer_branch
    %7 = sbr.rel target = $region3
  $region8: #{tpu_custom_call.1} parent=0 // loop_exit
    _

</llo_original>
